<compile_context>
chip_gen: v5e
topology: v5e:2x2
jax: 0.10.0
libtpu: 0.0.40
codegen_flags: <defaults>
</compile_context>

<pallas_src>
import functools

import jax
import jax.numpy as jnp
from jax import lax
from jax.experimental import pallas as pl
from jax.experimental.pallas import tpu as pltpu

KH = 4  # Conv2d kernel_size=(4, 1): 4 taps along H, nothing along W.


def _conv_rows(x, w_ref, how, w, hw):
    """4-tap 'valid' FIR along H of a (BN, H*W) flat tile -> (BN, Ho*W).

    In the row-major flat layout a shift of one image row (H axis) is a shift
    of W lanes, so each tap is a lane rotation (pltpu.roll == jnp.roll
    semantics) of the single loaded tile.  The accumulation runs at full H*W
    width (the trailing 3*W wrapped columns are garbage) and a single offset-0
    prefix slice keeps the Ho*W valid columns.
    """
    acc = w_ref[0] * x
    for k in range(1, KH):
        acc = acc + w_ref[k] * pltpu.roll(x, shift=hw - k * w, axis=1)
    return acc[:, :how]


def _make_stats_kernel(n, bn, how, w, hw):
    """Pass 1: conv + per-tile partial sum / sum-of-squares ("parallel")."""
    ragged = (n % bn) != 0

    def kernel(x_ref, w_ref, sum_ref, sq_ref):
        conv = _conv_rows(x_ref[...], w_ref, how, w, hw)
        if ragged:  # static check: mask batch rows past N in the last block
            rows = lax.broadcasted_iota(jnp.int32, conv.shape, 0)
            valid = (rows + pl.program_id(0) * bn) < n
            conv = jnp.where(valid, conv, 0.0)
        sum_ref[0] = jnp.sum(conv, keepdims=True)
        sq_ref[0] = jnp.sum(conv * conv, keepdims=True)

    return kernel


def _make_apply_kernel(how, w, hw, inv_count, eps):
    """Pass 2: recompute conv, apply BN folded into one scale/bias FMA."""

    def kernel(x_ref, w_ref, stats_ref, gamma_ref, beta_ref, o_ref):
        # Fold BN (training mode, biased variance) into y = conv*scale + bias.
        # All of the inter-pass scalar math lives here, fed from SMEM, and is
        # kept in the vector domain ((1,1) tiles) so rsqrt runs on the EUP.
        one = jnp.ones((1, 1), jnp.float32)
        mean = (stats_ref[0] * one) * inv_count
        ex2 = (stats_ref[1] * one) * inv_count
        var = jnp.maximum(ex2 - mean * mean, 0.0)
        scale = (gamma_ref[0] * one) * lax.rsqrt(var + eps)
        bias = beta_ref[0] * one - mean * scale
        conv = _conv_rows(x_ref[...], w_ref, how, w, hw)
        o_ref[...] = conv * scale + bias

    return kernel


def _pick_batch_tile(n, hw):
    """Rows (images) per block for the (bn, H*W) lane-dense tiling.

    bn is a multiple of 8 (sublane) unless a single block covers the whole
    batch; blocks target ~2 MiB while keeping a few grid steps so the software
    pipeline overlaps DMA/compute and both v7x cores get work.  Ragged tails
    are handled by masking, so bn need not divide n.
    """
    if n <= 16:
        return n                                    # tiny batch: one block
    row_bytes = 4 * hw
    bn_cap = max(8, ((2 * 1024 * 1024) // row_bytes) // 8 * 8)   # ~<= 2 MiB
    bn_overlap = max(8, (pl.cdiv(n, 4) // 8) * 8)                # >= 4 steps
    bn = min(bn_cap, bn_overlap, (n // 8) * 8)
    return max(bn, 8)


@functools.partial(jax.jit, static_argnames=("eps",))
def meta_forward(x_nchw, conv_w, conv_b, bn_gamma, bn_beta, eps=1e-5):
    """x_nchw: (N, 1, H, W) float32 -> (N, (H-3)*W) float32."""
    del conv_b  # Cancelled exactly by the BN mean subtraction (output-invariant).
    N, C, H, W = x_nchw.shape
    assert C == 1
    Ho = H - KH + 1
    HW, HOW = H * W, Ho * W

    # No wrapper transposes: (N,1,H,W) -> (N, H*W) is a free contiguous view,
    # and pass 2 emits the final (N, Ho*W) layout (== conv_out.view(N, -1)).
    x = x_nchw.reshape(N, HW).astype(jnp.float32)
    taps = conv_w.reshape(KH).astype(jnp.float32)

    bn = _pick_batch_tile(N, HW)
    grid = (pl.cdiv(N, bn),)
    cparams = pltpu.CompilerParams(
        dimension_semantics=("parallel",),          # megacore-shardable
        vmem_limit_bytes=32 * 1024 * 1024,
    )
    x_spec = pl.BlockSpec((bn, HW), lambda i: (i, 0))
    smem = pl.BlockSpec(memory_space=pltpu.MemorySpace.SMEM)

    # ---------- pass 1: conv + per-tile partial batch statistics ------------
    psum, psq = pl.pallas_call(
        _make_stats_kernel(N, bn, HOW, W, HW),
        out_shape=(jax.ShapeDtypeStruct((grid[0], 1, 1), jnp.float32),
                   jax.ShapeDtypeStruct((grid[0], 1, 1), jnp.float32)),
        grid=grid,
        in_specs=[x_spec, smem],
        out_specs=(pl.BlockSpec((1, 1, 1), lambda i: (i, 0, 0)),
                   pl.BlockSpec((1, 1, 1), lambda i: (i, 0, 0))),
        compiler_params=cparams,
    )(x, taps)

    # Tiny pairwise combine of the per-tile partials (single fused XLA op);
    # the remaining mean/var/scale/bias math happens inside pass 2.
    stats = jnp.stack([jnp.sum(psum), jnp.sum(psq)])
    inv_count = 1.0 / float(N * Ho * W)

    # ---------- pass 2: recompute conv, y = conv*scale + bias ---------------
    y = pl.pallas_call(
        _make_apply_kernel(HOW, W, HW, inv_count, float(eps)),
        out_shape=jax.ShapeDtypeStruct((N, HOW), jnp.float32),
        grid=grid,
        in_specs=[x_spec, smem, smem, smem, smem],
        out_specs=pl.BlockSpec((bn, HOW), lambda i: (i, 0)),
        compiler_params=cparams,
    )(x, taps, stats,
      bn_gamma.astype(jnp.float32), bn_beta.astype(jnp.float32))

    return y  # already (N, Ho*W) == conv_out.view(N, -1); no glue transpose

# TODO(synk): BatchNorm running-mean/var buffer updates (a training-time side
# effect of nn.BatchNorm2d) are not emitted; only the forward output is computed.


def meta_reference(x_nchw, conv_w, conv_b, bn_gamma, bn_beta, eps=1e-5):
    """Pure-JAX reference (faithful: includes conv bias, two-pass variance)."""
    N, C, H, W = x_nchw.shape
    Ho = H - KH + 1
    x = x_nchw[:, 0, :, :].astype(jnp.float32)
    taps = conv_w.reshape(KH).astype(jnp.float32)
    acc = sum(taps[k] * x[:, k:k + Ho, :] for k in range(KH)) + conv_b[0]
    mean = jnp.mean(acc)
    var = jnp.mean((acc - mean) ** 2)
    out = bn_gamma[0] * (acc - mean) * lax.rsqrt(var + eps) + bn_beta[0]
    return out.reshape(N, Ho * W)


if __name__ == "__main__":
    key = jax.random.PRNGKey(0)
    kx, kw, kb = jax.random.split(key, 3)

    # Small NCHW input consistent with Conv2d(in_channels=1, ...)
    N, C, H, W = 2, 1, 16, 16
    x = jax.random.normal(kx, (N, C, H, W), dtype=jnp.float32)

    # Deterministic parameter init (PyTorch-style uniform bounds, fan_in = 4)
    bound = 1.0 / jnp.sqrt(4.0)
    conv_w = jax.random.uniform(kw, (1, 1, KH, 1), jnp.float32, -bound, bound)
    conv_b = jax.random.uniform(kb, (1,), jnp.float32, -bound, bound)
    bn_gamma = jnp.ones((1,), jnp.float32)
    bn_beta = jnp.zeros((1,), jnp.float32)

    out = meta_forward(x, conv_w, conv_b, bn_gamma, bn_beta)
    out = jax.block_until_ready(out)

    ref = meta_reference(x, conv_w, conv_b, bn_gamma, bn_beta)
    assert out.shape == (N, (H - KH + 1) * W), out.shape
    # Folded-BN / one-pass-stats / bias-cancellation refactors differ from the
    # two-pass reference only at the last-ulp level.
    assert jnp.allclose(out, ref, atol=3e-5, rtol=3e-5), "mismatch vs reference"

    print("KERNEL_OK")
</pallas_src>

<mosaic_0001>
module attributes {stable_mosaic.version = 11 : i64} {
  func.func @kernel(%arg0: i32, %arg1: memref<2x256xf32, #tpu.memory_space<vmem>>, %arg2: memref<4xf32, #tpu.memory_space<smem>>, %arg3: memref<1x1x1xf32, #tpu.memory_space<vmem>>, %arg4: memref<1x1x1xf32, #tpu.memory_space<vmem>>) attributes {dimension_semantics = [#tpu.dimension_semantics<parallel>], iteration_bounds = array<i64: 1>, scalar_prefetch = 0 : i64, scratch_operands = 0 : i64, tpu.core_type = #tpu.core_type<tc>, window_params = [{transform_indices = @transform_0, window_bounds = array<i64: 2, 256>}, {transform_indices = @transform_1, window_bounds = array<i64: 4>}, {transform_indices = @transform_2, window_bounds = array<i64: 1, 1, 1>}, {transform_indices = @transform_3, window_bounds = array<i64: 1, 1, 1>}]} {
    %c0 = arith.constant 0 : index
    %c0_0 = arith.constant 0 : index
    %0 = vector.load %arg1[%c0, %c0_0] : memref<2x256xf32, #tpu.memory_space<vmem>>, vector<2x256xf32>
    %c0_1 = arith.constant 0 : index
    %1 = memref.load %arg2[%c0_1] : memref<4xf32, #tpu.memory_space<smem>>
    %2 = vector.broadcast %1 : f32 to vector<2x256xf32>
    %3 = arith.mulf %2, %0 : vector<2x256xf32>
    %c1 = arith.constant 1 : index
    %4 = memref.load %arg2[%c1] : memref<4xf32, #tpu.memory_space<smem>>
    %c240_i32 = arith.constant 240 : i32
    %5 = tpu.dynamic_rotate %0 by %c240_i32 dim 1 : vector<2x256xf32>, i32 -> vector<2x256xf32>
    %6 = vector.broadcast %4 : f32 to vector<2x256xf32>
    %7 = arith.mulf %6, %5 : vector<2x256xf32>
    %8 = arith.addf %3, %7 : vector<2x256xf32>
    %c2 = arith.constant 2 : index
    %9 = memref.load %arg2[%c2] : memref<4xf32, #tpu.memory_space<smem>>
    %c224_i32 = arith.constant 224 : i32
    %10 = tpu.dynamic_rotate %0 by %c224_i32 dim 1 : vector<2x256xf32>, i32 -> vector<2x256xf32>
    %11 = vector.broadcast %9 : f32 to vector<2x256xf32>
    %12 = arith.mulf %11, %10 : vector<2x256xf32>
    %13 = arith.addf %8, %12 : vector<2x256xf32>
    %c3 = arith.constant 3 : index
    %14 = memref.load %arg2[%c3] : memref<4xf32, #tpu.memory_space<smem>>
    %c208_i32 = arith.constant 208 : i32
    %15 = tpu.dynamic_rotate %0 by %c208_i32 dim 1 : vector<2x256xf32>, i32 -> vector<2x256xf32>
    %16 = vector.broadcast %14 : f32 to vector<2x256xf32>
    %17 = arith.mulf %16, %15 : vector<2x256xf32>
    %18 = arith.addf %13, %17 : vector<2x256xf32>
    %19 = vector.extract_strided_slice %18 {offsets = [0, 0], sizes = [2, 208], strides = [1, 1]} : vector<2x256xf32> to vector<2x208xf32>
    %20 = vector.shape_cast %19 : vector<2x208xf32> to vector<1x2x208xf32>
    %cst = arith.constant dense<0.000000e+00> : vector<1xf32>
    %21 = vector.multi_reduction <add>, %20, %cst [1, 2] : vector<1x2x208xf32> to vector<1xf32>
    %22 = vector.shape_cast %21 : vector<1xf32> to vector<1x1x1xf32>
    %23 = vector.extract %22[0, 0, 0] : f32 from vector<1x1x1xf32>
    %24 = vector.broadcast %23 : f32 to vector<1x1xf32>
    %c0_2 = arith.constant 0 : index
    %c0_3 = arith.constant 0 : index
    %c0_4 = arith.constant 0 : index
    %25 = vector.load %arg3[%c0_2, %c0_3, %c0_4] : memref<1x1x1xf32, #tpu.memory_space<vmem>>, vector<1x1x1xf32>
    %26 = vector.shape_cast %25 : vector<1x1x1xf32> to vector<1x1xf32>
    %27 = vector.shape_cast %24 : vector<1x1xf32> to vector<1x1x1xf32>
    tpu.vector_store %arg3[%c0_2, %c0_3, %c0_4], %27 {strides = array<i32>} : memref<1x1x1xf32, #tpu.memory_space<vmem>>, vector<1x1x1xf32>,
    %28 = arith.mulf %19, %19 : vector<2x208xf32>
    %29 = vector.shape_cast %28 : vector<2x208xf32> to vector<1x2x208xf32>
    %cst_5 = arith.constant dense<0.000000e+00> : vector<1xf32>
    %30 = vector.multi_reduction <add>, %29, %cst_5 [1, 2] : vector<1x2x208xf32> to vector<1xf32>
    %31 = vector.shape_cast %30 : vector<1xf32> to vector<1x1x1xf32>
    %32 = vector.extract %31[0, 0, 0] : f32 from vector<1x1x1xf32>
    %33 = vector.broadcast %32 : f32 to vector<1x1xf32>
    %c0_6 = arith.constant 0 : index
    %c0_7 = arith.constant 0 : index
    %c0_8 = arith.constant 0 : index
    %34 = vector.load %arg4[%c0_6, %c0_7, %c0_8] : memref<1x1x1xf32, #tpu.memory_space<vmem>>, vector<1x1x1xf32>
    %35 = vector.shape_cast %34 : vector<1x1x1xf32> to vector<1x1xf32>
    %36 = vector.shape_cast %33 : vector<1x1xf32> to vector<1x1x1xf32>
    tpu.vector_store %arg4[%c0_6, %c0_7, %c0_8], %36 {strides = array<i32>} : memref<1x1x1xf32, #tpu.memory_space<vmem>>, vector<1x1x1xf32>,
    return
  }
  func.func @transform_0(%arg0: i32) -> (i32, i32) {
    %c0_i32 = arith.constant 0 : i32
    %c0_i32_0 = arith.constant 0 : i32
    return %arg0, %c0_i32 : i32, i32
  }
  func.func @transform_1(%arg0: i32) -> i32 {
    %c0_i32 = arith.constant 0 : i32
    %c0_i32_0 = arith.constant 0 : i32
    return %c0_i32 : i32
  }
  func.func @transform_2(%arg0: i32) -> (i32, i32, i32) {
    %c0_i32 = arith.constant 0 : i32
    %c0_i32_0 = arith.constant 0 : i32
    %c0_i32_1 = arith.constant 0 : i32
    return %arg0, %c0_i32, %c0_i32_0 : i32, i32, i32
  }
  func.func @transform_3(%arg0: i32) -> (i32, i32, i32) {
    %c0_i32 = arith.constant 0 : i32
    %c0_i32_0 = arith.constant 0 : i32
    %c0_i32_1 = arith.constant 0 : i32
    return %arg0, %c0_i32, %c0_i32_0 : i32, i32, i32
  }
}

module attributes {stable_mosaic.version = 11 : i64} {
  func.func @kernel(%arg0: i32, %arg1: memref<2x256xf32, #tpu.memory_space<vmem>>, %arg2: memref<4xf32, #tpu.memory_space<smem>>, %arg3: memref<2xf32, #tpu.memory_space<smem>>, %arg4: memref<1xf32, #tpu.memory_space<smem>>, %arg5: memref<1xf32, #tpu.memory_space<smem>>, %arg6: memref<2x208xf32, #tpu.memory_space<vmem>>) attributes {dimension_semantics = [#tpu.dimension_semantics<parallel>], iteration_bounds = array<i64: 1>, scalar_prefetch = 0 : i64, scratch_operands = 0 : i64, tpu.core_type = #tpu.core_type<tc>, window_params = [{transform_indices = @transform_0, window_bounds = array<i64: 2, 256>}, {transform_indices = @transform_1, window_bounds = array<i64: 4>}, {transform_indices = @transform_2, window_bounds = array<i64: 2>}, {transform_indices = @transform_3, window_bounds = array<i64: 1>}, {transform_indices = @transform_4, window_bounds = array<i64: 1>}, {transform_indices = @transform_5, window_bounds = array<i64: 2, 208>}]} {
    %cst = arith.constant 1.000000e+00 : f32
    %0 = vector.broadcast %cst : f32 to vector<1x1xf32>
    %c0 = arith.constant 0 : index
    %1 = memref.load %arg3[%c0] : memref<2xf32, #tpu.memory_space<smem>>
    %2 = vector.broadcast %1 : f32 to vector<1x1xf32>
    %3 = arith.mulf %2, %0 : vector<1x1xf32>
    %cst_0 = arith.constant 0.00240384624 : f32
    %4 = vector.broadcast %cst_0 : f32 to vector<1x1xf32>
    %5 = arith.mulf %3, %4 : vector<1x1xf32>
    %c1 = arith.constant 1 : index
    %6 = memref.load %arg3[%c1] : memref<2xf32, #tpu.memory_space<smem>>
    %7 = vector.broadcast %6 : f32 to vector<1x1xf32>
    %8 = arith.mulf %7, %0 : vector<1x1xf32>
    %cst_1 = arith.constant 0.00240384624 : f32
    %9 = vector.broadcast %cst_1 : f32 to vector<1x1xf32>
    %10 = arith.mulf %8, %9 : vector<1x1xf32>
    %11 = arith.mulf %5, %5 : vector<1x1xf32>
    %12 = arith.subf %10, %11 : vector<1x1xf32>
    %cst_2 = arith.constant 0.000000e+00 : f32
    %13 = vector.broadcast %cst_2 : f32 to vector<1x1xf32>
    %14 = arith.maximumf %12, %13 : vector<1x1xf32>
    %c0_3 = arith.constant 0 : index
    %15 = memref.load %arg4[%c0_3] : memref<1xf32, #tpu.memory_space<smem>>
    %16 = vector.broadcast %15 : f32 to vector<1x1xf32>
    %17 = arith.mulf %16, %0 : vector<1x1xf32>
    %cst_4 = arith.constant 9.99999974E-6 : f32
    %18 = vector.broadcast %cst_4 : f32 to vector<1x1xf32>
    %19 = arith.addf %14, %18 : vector<1x1xf32>
    %20 = math.rsqrt %19 : vector<1x1xf32>
    %21 = arith.mulf %17, %20 : vector<1x1xf32>
    %c0_5 = arith.constant 0 : index
    %22 = memref.load %arg5[%c0_5] : memref<1xf32, #tpu.memory_space<smem>>
    %23 = vector.broadcast %22 : f32 to vector<1x1xf32>
    %24 = arith.mulf %23, %0 : vector<1x1xf32>
    %25 = arith.mulf %5, %21 : vector<1x1xf32>
    %26 = arith.subf %24, %25 : vector<1x1xf32>
    %c0_6 = arith.constant 0 : index
    %c0_7 = arith.constant 0 : index
    %27 = vector.load %arg1[%c0_6, %c0_7] : memref<2x256xf32, #tpu.memory_space<vmem>>, vector<2x256xf32>
    %c0_8 = arith.constant 0 : index
    %28 = memref.load %arg2[%c0_8] : memref<4xf32, #tpu.memory_space<smem>>
    %29 = vector.broadcast %28 : f32 to vector<2x256xf32>
    %30 = arith.mulf %29, %27 : vector<2x256xf32>
    %c1_9 = arith.constant 1 : index
    %31 = memref.load %arg2[%c1_9] : memref<4xf32, #tpu.memory_space<smem>>
    %c240_i32 = arith.constant 240 : i32
    %32 = tpu.dynamic_rotate %27 by %c240_i32 dim 1 : vector<2x256xf32>, i32 -> vector<2x256xf32>
    %33 = vector.broadcast %31 : f32 to vector<2x256xf32>
    %34 = arith.mulf %33, %32 : vector<2x256xf32>
    %35 = arith.addf %30, %34 : vector<2x256xf32>
    %c2 = arith.constant 2 : index
    %36 = memref.load %arg2[%c2] : memref<4xf32, #tpu.memory_space<smem>>
    %c224_i32 = arith.constant 224 : i32
    %37 = tpu.dynamic_rotate %27 by %c224_i32 dim 1 : vector<2x256xf32>, i32 -> vector<2x256xf32>
    %38 = vector.broadcast %36 : f32 to vector<2x256xf32>
    %39 = arith.mulf %38, %37 : vector<2x256xf32>
    %40 = arith.addf %35, %39 : vector<2x256xf32>
    %c3 = arith.constant 3 : index
    %41 = memref.load %arg2[%c3] : memref<4xf32, #tpu.memory_space<smem>>
    %c208_i32 = arith.constant 208 : i32
    %42 = tpu.dynamic_rotate %27 by %c208_i32 dim 1 : vector<2x256xf32>, i32 -> vector<2x256xf32>
    %43 = vector.broadcast %41 : f32 to vector<2x256xf32>
    %44 = arith.mulf %43, %42 : vector<2x256xf32>
    %45 = arith.addf %40, %44 : vector<2x256xf32>
    %46 = vector.extract_strided_slice %45 {offsets = [0, 0], sizes = [2, 208], strides = [1, 1]} : vector<2x256xf32> to vector<2x208xf32>
    %47 = vector.broadcast %21 : vector<1x1xf32> to vector<2x208xf32>
    %48 = arith.mulf %46, %47 : vector<2x208xf32>
    %49 = vector.broadcast %26 : vector<1x1xf32> to vector<2x208xf32>
    %50 = arith.addf %48, %49 : vector<2x208xf32>
    %c0_10 = arith.constant 0 : index
    %c0_11 = arith.constant 0 : index
    %51 = vector.load %arg6[%c0_10, %c0_11] : memref<2x208xf32, #tpu.memory_space<vmem>>, vector<2x208xf32>
    tpu.vector_store %arg6[%c0_10, %c0_11], %50 {strides = array<i32>} : memref<2x208xf32, #tpu.memory_space<vmem>>, vector<2x208xf32>,
    return
  }
  func.func @transform_0(%arg0: i32) -> (i32, i32) {
    %c0_i32 = arith.constant 0 : i32
    %c0_i32_0 = arith.constant 0 : i32
    return %arg0, %c0_i32 : i32, i32
  }
  func.func @transform_1(%arg0: i32) -> i32 {
    %c0_i32 = arith.constant 0 : i32
    %c0_i32_0 = arith.constant 0 : i32
    return %c0_i32 : i32
  }
  func.func @transform_2(%arg0: i32) -> i32 {
    %c0_i32 = arith.constant 0 : i32
    %c0_i32_0 = arith.constant 0 : i32
    return %c0_i32 : i32
  }
  func.func @transform_3(%arg0: i32) -> i32 {
    %c0_i32 = arith.constant 0 : i32
    %c0_i32_0 = arith.constant 0 : i32
    return %c0_i32 : i32
  }
  func.func @transform_4(%arg0: i32) -> i32 {
    %c0_i32 = arith.constant 0 : i32
    %c0_i32_0 = arith.constant 0 : i32
    return %c0_i32 : i32
  }
  func.func @transform_5(%arg0: i32) -> (i32, i32) {
    %c0_i32 = arith.constant 0 : i32
    %c0_i32_0 = arith.constant 0 : i32
    return %arg0, %c0_i32 : i32, i32
  }
}

</mosaic_0001>

<llo_original>
// kernel: meta_forward.2
$region0: #{meta_forward.2}
  #allocation0 [shape = 'u32[]', space=smem, size = 0x4, offset = 0x4, fixed_abs, tag = 'smem constant byte address 0x4 - core index']
  #allocation1 [shape = 'u32[72,128]{1,0:T(1,128)}', space=vmem, size = 0x9000, scoped, tag = 'internal scratch']
  %s0 = inlined_call_operand.vmem [shape: f32[2,256], index: 0, kind: input, shape index: {}]
  %s1 = inlined_call_operand.vmem [shape: f32[4], index: 1, kind: input, shape index: {}]
  %s2 = inlined_call_operand.hbm [shape: f32[1,1,1], index: 2, kind: output, shape index: {0}]
  %s3 = inlined_call_operand.hbm [shape: f32[1,1,1], index: 3, kind: output, shape index: {1}]
  %4 = xla_tuple %s2, %s3
  %s5 = sld [smem:[#allocation0]]
  $region30: #{meta_forward.2} parent=0
    _
  %s7 = ssub.s32 1, %s5
  %s8 = scalar_select 0, %s7, %s5
  $region1: #{meta_forward.2} parent=0
    #allocation2 [shape = 'u8[512]{0}', space=smem, size = 0x200, scoped, tag = 'input window, operand 1, single buffered']
    #allocation3 [shape = 's32[1]{0}', space=sflag, size = 0x4, scoped, tag = 'scoped memory for meta_forward.2']
    #allocation4 [shape = 's32[1]{0}', space=sflag, size = 0x4, scoped, tag = 'scoped memory for meta_forward.2']
    #allocation5 [shape = 'u8[512]{0}', space=vmem, size = 0x400, scoped, tag = 'output window, operand 0, single buffered']
    #allocation6 [shape = 'u8[512]{0}', space=vmem, size = 0x400, scoped, tag = 'output window, operand 1, single buffered']
    #allocation7 [shape = 's32[1]{0}', space=sflag, size = 0x4, scoped, tag = 'scoped memory for meta_forward.2']
    %9 = vsyncpa [#allocation4], 0
    %10 = vsyncpa [#allocation3], 0
    %11 = vsyncpa [#allocation7], 0
    // Predicated region
    $region2: #{meta_forward.2} parent=1 // pred_check
      _
    $region3: #{meta_forward.2} parent=1 // pred_check_branch
      %13 = sbr.rel (0) target = $region5
    $region4: #{meta_forward.2} parent=1 // pred_region
      _
    $region5: #{meta_forward.2} parent=1 // pred_fallthru
      _
    // Predicated region
    $region6: #{meta_forward.2} parent=1 // pred_check
      _
    $region7: #{meta_forward.2} parent=1 // pred_check_branch
      %15 = sbr.rel (0) target = $region9
    $region8: #{meta_forward.2} parent=1 // pred_region
      %17 = vsyncadd [#allocation4], 0
      %s19 = sshll.u32 %s1, 4
      %s20 = int_to_ptr.vmem [resolvable:$true] %s19
      %22 = dma.vmem_to_smem %s20, 16, [#allocation2], [#allocation4]
    $region9: #{meta_forward.2} parent=1 // pred_fallthru
      _
    // Predicated region
    $region10: #{meta_forward.2} parent=1 // pred_check
      _
    $region11: #{meta_forward.2} parent=1 // pred_check_branch
      %24 = sbr.rel (0) target = $region13
    $region12: #{meta_forward.2} parent=1 // pred_region
      %26 = dma.done [#allocation4], 16
    $region13: #{meta_forward.2} parent=1 // pred_fallthru
      _
    %27 = sfence
    %v28 = vld [vmem:[%s0] sm:$0xf]
    %s29 = sld [smem:[#allocation2]]
    %v30 = vstv %s29
    %v31 = vmul.f32 %v30, %v28
    %s32 = sld [smem:[#allocation2 + $0x1]]
    %34 = vst [vmem:[#allocation1] ss:$4 sm:$0xff] %v28
    %v35 = vld.sshfl [vmem:[#allocation1] sm:$0xff pattern:$0x73625140]
    %v36 = vld.sshfl [vmem:[#allocation1 + $0x8] sm:$0xff pattern:$0x73625140]
    %39 = vrot.lane.b32.xlu0 %v35, 112
    %v40 = vpop.permute.xlu0 %39
    %41 = vrot.lane.b32.xlu0 %v36, 112
    %v42 = vpop.permute.xlu0 %41
    %v43 = vlaneseq
    %v44 = vand.u32 %v43, 127
    %vm45 = vcmp.lt.s32.totalorder %v44, 112
    %v46 = vsel %vm45, %v40, %v42
    %v47 = vsel %vm45, %v42, %v40
    %v48 = vstv %s32
    %v49 = vmul.f32 %v48, %v46
    %v50 = vmul.f32 %v48, %v47
    %v53 = vrot.slane %v50, 6
    %vm54 = vcmask 1041408
    %v55 = vsel %vm54, %v49, %v53
    %v57 = vadd.f32 %v31, %v55
    %s58 = sld [smem:[#allocation2 + $0x2]]
    %59 = vst [vmem:[#allocation1] ss:$4 sm:$0xff] %v28
    %v60 = vld.sshfl [vmem:[#allocation1] sm:$0xff pattern:$0x73625140]
    %v61 = vld.sshfl [vmem:[#allocation1 + $0x8] sm:$0xff pattern:$0x73625140]
    %64 = vrot.lane.b32.xlu0 %v60, 96
    %v65 = vpop.permute.xlu0 %64
    %66 = vrot.lane.b32.xlu0 %v61, 96
    %v67 = vpop.permute.xlu0 %66
    %vm68 = vcmp.lt.s32.totalorder %v44, 96
    %v69 = vsel %vm68, %v65, %v67
    %v70 = vsel %vm68, %v67, %v65
    %v71 = vstv %s58
    %v72 = vmul.f32 %v71, %v69
    %v73 = vmul.f32 %v71, %v70
    %v76 = vrot.slane %v73, 6
    %v77 = vsel %vm54, %v72, %v76
    %v79 = vadd.f32 %v57, %v77
    %s80 = sld [smem:[#allocation2 + $0x3]]
    %81 = vst [vmem:[#allocation1] ss:$4 sm:$0xff] %v28
    %v82 = vld.sshfl [vmem:[#allocation1] sm:$0xff pattern:$0x73625140]
    %v83 = vld.sshfl [vmem:[#allocation1 + $0x8] sm:$0xff pattern:$0x73625140]
    %86 = vrot.lane.b32.xlu0 %v82, 80
    %v87 = vpop.permute.xlu0 %86
    %88 = vrot.lane.b32.xlu0 %v83, 80
    %v89 = vpop.permute.xlu0 %88
    %vm90 = vcmp.lt.s32.totalorder %v44, 80
    %v91 = vsel %vm90, %v87, %v89
    %v92 = vsel %vm90, %v89, %v87
    %v93 = vstv %s80
    %v94 = vmul.f32 %v93, %v91
    %v95 = vmul.f32 %v93, %v92
    %v98 = vrot.slane %v95, 6
    %v99 = vsel %vm54, %v94, %v98
    %v101 = vadd.f32 %v79, %v99
    %103 = vst [vmem:[#allocation1] ss:$4 sm:$0xff] %v101
    %v104 = vld.sshfl [vmem:[#allocation1] sm:$0xff pattern:$0x73625140]
    %v105 = vld.sshfl [vmem:[#allocation1 + $0x8] sm:$0xff pattern:$0x73625140]
    %v108 = vsel %vm54, %v104, 0.0
    %vm109 = vcmask 648192
    %v110 = vsel %vm109, %v105, 0.0
    %v111 = vadd.f32 %v108, %v110
    %112 = vadd.xlane.f32.xlu0 %v111
    %v113 = vpop.xlane.xlu0 %112
    %v114 = vrot.slane %v113, 4
    %v115 = vadd.f32 %v113, %v114
    %v116 = vrot.slane %v115, 2
    %v117 = vadd.f32 %v115, %v116
    %v118 = vrot.slane %v117, 1
    %v119 = vadd.f32 %v117, %v118
    %s120 = vtos %v119
    %v121 = vstv %s120
    %vm122 = vcmask 0
    %123 = vst.msk [vmem:[#allocation5] sm:$0x1] %vm122, %v121
    %v124 = vmul.f32 %v101, %v101
    %126 = vst [vmem:[#allocation1] ss:$4 sm:$0xff] %v124
    %v127 = vld.sshfl [vmem:[#allocation1] sm:$0xff pattern:$0x73625140]
    %v128 = vld.sshfl [vmem:[#allocation1 + $0x8] sm:$0xff pattern:$0x73625140]
    %v131 = vsel %vm54, %v127, 0.0
    %v132 = vsel %vm109, %v128, 0.0
    %v133 = vadd.f32 %v131, %v132
    %134 = vadd.xlane.f32.xlu0 %v133
    %v135 = vpop.xlane.xlu0 %134
    %v136 = vrot.slane %v135, 4
    %v137 = vadd.f32 %v135, %v136
    %v138 = vrot.slane %v137, 2
    %v139 = vadd.f32 %v137, %v138
    %v140 = vrot.slane %v139, 1
    %v141 = vadd.f32 %v139, %v140
    %s142 = vtos %v141
    %v143 = vstv %s142
    %144 = vst.msk [vmem:[#allocation6] sm:$0x1] %vm122, %v143
    // Predicated region
    $region14: #{meta_forward.2} parent=1 // pred_check
      _
    $region15: #{meta_forward.2} parent=1 // pred_check_branch
      %146 = sbr.rel (0) target = $region17
    $region16: #{meta_forward.2} parent=1 // pred_region
      %148 = vsyncadd [#allocation3], 0
      %s150 = sshll.u32 [#allocation5], 4
      %s151 = int_to_ptr.vmem [resolvable:$true] %s150
      %s152 = sshll.u32 %s2, 4
      %s153 = int_to_ptr.hbm [resolvable:$true] %s152
      %155 = dma.vmem_to_hbm [thread:$0]  %s151, 16, %s153, [#allocation3]
    $region17: #{meta_forward.2} parent=1 // pred_fallthru
      _
    // Predicated region
    $region18: #{meta_forward.2} parent=1 // pred_check
      _
    $region19: #{meta_forward.2} parent=1 // pred_check_branch
      %157 = sbr.rel (0) target = $region21
    $region20: #{meta_forward.2} parent=1 // pred_region
      %159 = vsyncadd [#allocation7], 0
      %s161 = sshll.u32 [#allocation6], 4
      %s162 = int_to_ptr.vmem [resolvable:$true] %s161
      %s163 = sshll.u32 %s3, 4
      %s164 = int_to_ptr.hbm [resolvable:$true] %s163
      %166 = dma.vmem_to_hbm [thread:$0]  %s162, 16, %s164, [#allocation7]
    $region21: #{meta_forward.2} parent=1 // pred_fallthru
      _
    // Predicated region
    $region22: #{meta_forward.2} parent=1 // pred_check
      _
    $region23: #{meta_forward.2} parent=1 // pred_check_branch
      %168 = sbr.rel (0) target = $region25
    $region24: #{meta_forward.2} parent=1 // pred_region
      %170 = dma.done [#allocation3], 16
    $region25: #{meta_forward.2} parent=1 // pred_fallthru
      _
    // Predicated region
    $region26: #{meta_forward.2} parent=1 // pred_check
      _
    $region27: #{meta_forward.2} parent=1 // pred_check_branch
      %172 = sbr.rel (0) target = $region29
    $region28: #{meta_forward.2} parent=1 // pred_region
      %174 = dma.done [#allocation7], 16
    $region29: #{meta_forward.2} parent=1 // pred_fallthru
      _
    %175 = vsyncpa [#allocation3], 1
    %176 = vsyncpa [#allocation7], 1
    %177 = vsyncpa [#allocation4], 1

// kernel: meta_forward.3
$region0: #{meta_forward.3}
  #allocation0 [shape = 'u32[]', space=smem, size = 0x4, offset = 0x4, fixed_abs, tag = 'smem constant byte address 0x4 - core index']
  #allocation1 [shape = 'u32[72,128]{1,0:T(1,128)}', space=vmem, size = 0x9000, scoped, tag = 'internal scratch']
  #allocation2 [shape = 'f32[1]{0:T(128)S(6)}', space=smem, size = 0x200, scoped, tag = 'scoped memory for meta_forward.3']
  #allocation3 [shape = 'f32[1]{0:T(128)S(6)}', space=smem, size = 0x200, scoped, tag = 'scoped memory for meta_forward.3']
  %s0 = inlined_call_operand.vmem [shape: f32[2,256], index: 0, kind: input, shape index: {}]
  %s1 = inlined_call_operand.vmem [shape: f32[4], index: 1, kind: input, shape index: {}]
  %s2 = inlined_call_operand.vmem [shape: f32[2], index: 2, kind: input, shape index: {}]
  %s3 = inlined_call_operand.<no memory space> [shape: f32[1], index: 3, kind: input, shape index: {}]
  %s4 = inlined_call_operand.<no memory space> [shape: f32[1], index: 4, kind: input, shape index: {}]
  %s5 = inlined_call_operand.hbm [shape: f32[2,208], index: 5, kind: output, shape index: {}]
  %s6 = sld [smem:[#allocation0]]
  $region38: #{meta_forward.3} parent=0
    _
  %s8 = ssub.s32 1, %s6
  %s9 = scalar_select 0, %s8, %s6
  %10 = sst [smem:[#allocation2]] %s3
  %11 = sst [smem:[#allocation3]] %s4
  $region1: #{meta_forward.3} parent=0
    #allocation4 [shape = 'u8[512]{0}', space=smem, size = 0x200, scoped, tag = 'input window, operand 1, single buffered']
    #allocation5 [shape = 's32[1]{0}', space=sflag, size = 0x4, scoped, tag = 'scoped memory for meta_forward.3']
    #allocation6 [shape = 's32[1]{0}', space=sflag, size = 0x4, scoped, tag = 'scoped memory for meta_forward.3']
    #allocation7 [shape = 'u8[512]{0}', space=smem, size = 0x200, scoped, tag = 'input window, operand 2, single buffered']
    #allocation8 [shape = 's32[1]{0}', space=sflag, size = 0x4, scoped, tag = 'scoped memory for meta_forward.3']
    #allocation9 [shape = 'u8[2048]{0}', space=vmem, size = 0x800, scoped, tag = 'output window, operand 0, single buffered']
    %12 = vsyncpa [#allocation6], 0
    %13 = vsyncpa [#allocation8], 0
    %14 = vsyncpa [#allocation5], 0
    // Predicated region
    $region2: #{meta_forward.3} parent=1 // pred_check
      _
    $region3: #{meta_forward.3} parent=1 // pred_check_branch
      %16 = sbr.rel (0) target = $region5
    $region4: #{meta_forward.3} parent=1 // pred_region
      _
    $region5: #{meta_forward.3} parent=1 // pred_fallthru
      _
    // Predicated region
    $region6: #{meta_forward.3} parent=1 // pred_check
      _
    $region7: #{meta_forward.3} parent=1 // pred_check_branch
      %18 = sbr.rel (0) target = $region9
    $region8: #{meta_forward.3} parent=1 // pred_region
      %20 = vsyncadd [#allocation6], 0
      %s22 = sshll.u32 %s1, 4
      %s23 = int_to_ptr.vmem [resolvable:$true] %s22
      %25 = dma.vmem_to_smem %s23, 16, [#allocation4], [#allocation6]
    $region9: #{meta_forward.3} parent=1 // pred_fallthru
      _
    // Predicated region
    $region10: #{meta_forward.3} parent=1 // pred_check
      _
    $region11: #{meta_forward.3} parent=1 // pred_check_branch
      %27 = sbr.rel (0) target = $region13
    $region12: #{meta_forward.3} parent=1 // pred_region
      %29 = vsyncadd [#allocation8], 0
      %s31 = sshll.u32 %s2, 4
      %s32 = int_to_ptr.vmem [resolvable:$true] %s31
      %34 = dma.vmem_to_smem %s32, 16, [#allocation7], [#allocation8]
    $region13: #{meta_forward.3} parent=1 // pred_fallthru
      _
    // Predicated region
    $region14: #{meta_forward.3} parent=1 // pred_check
      _
    $region15: #{meta_forward.3} parent=1 // pred_check_branch
      %36 = sbr.rel (0) target = $region17
    $region16: #{meta_forward.3} parent=1 // pred_region
      _
    $region17: #{meta_forward.3} parent=1 // pred_fallthru
      _
    // Predicated region
    $region18: #{meta_forward.3} parent=1 // pred_check
      _
    $region19: #{meta_forward.3} parent=1 // pred_check_branch
      %38 = sbr.rel (0) target = $region21
    $region20: #{meta_forward.3} parent=1 // pred_region
      _
    $region21: #{meta_forward.3} parent=1 // pred_fallthru
      _
    // Predicated region
    $region22: #{meta_forward.3} parent=1 // pred_check
      _
    $region23: #{meta_forward.3} parent=1 // pred_check_branch
      %40 = sbr.rel (0) target = $region25
    $region24: #{meta_forward.3} parent=1 // pred_region
      %42 = dma.done [#allocation6], 16
    $region25: #{meta_forward.3} parent=1 // pred_fallthru
      _
    // Predicated region
    $region26: #{meta_forward.3} parent=1 // pred_check
      _
    $region27: #{meta_forward.3} parent=1 // pred_check_branch
      %44 = sbr.rel (0) target = $region29
    $region28: #{meta_forward.3} parent=1 // pred_region
      %46 = dma.done [#allocation8], 16
    $region29: #{meta_forward.3} parent=1 // pred_fallthru
      _
    %47 = sfence
    %s48 = sld [smem:[#allocation7]]
    %v49 = vstv %s48
    %v50 = vmul.f32 %v49, 0.0024038462
    %s51 = sld [smem:[#allocation7 + $0x1]]
    %v52 = vstv %s51
    %v53 = vmul.f32 %v52, 0.0024038462
    %v54 = vmul.f32 %v50, %v50
    %v55 = vsub.f32 %v53, %v54
    %v56 = vmax.f32 %v55, 0.0
    %s57 = sld [smem:[#allocation2]]
    %v58 = vstv %s57
    %v59 = vadd.f32 %v56, 1e-05
    %v60 = vrsqrt.pop %v59
    %v61 = vmul.f32 %v60, %v59
    %v62 = vmul.f32 %v61, %v60
    %v63 = vmul.f32 0.5, %v62
    %v64 = vsub.f32 1.5, %v63
    %v65 = vmul.f32 %v60, %v64
    %vm66 = vweird.f32 %v59
    %vm67 = vweird.f32 %v60
    %vm68 = vmor %vm66, %vm67
    %v69 = vsel %vm68, %v60, %v65
    %v70 = vmul.f32 %v58, %v69
    %s71 = sld [smem:[#allocation3]]
    %v72 = vstv %s71
    %v73 = vmul.f32 %v50, %v70
    %v74 = vsub.f32 %v72, %v73
    %v75 = vld [vmem:[%s0] sm:$0xf]
    %s76 = sld [smem:[#allocation4]]
    %v77 = vstv %s76
    %v78 = vmul.f32 %v77, %v75
    %s79 = sld [smem:[#allocation4 + $0x1]]
    %81 = vst [vmem:[#allocation1] ss:$4 sm:$0xff] %v75
    %v82 = vld.sshfl [vmem:[#allocation1] sm:$0xff pattern:$0x73625140]
    %v83 = vld.sshfl [vmem:[#allocation1 + $0x8] sm:$0xff pattern:$0x73625140]
    %86 = vrot.lane.b32.xlu0 %v82, 112
    %v87 = vpop.permute.xlu0 %86
    %88 = vrot.lane.b32.xlu0 %v83, 112
    %v89 = vpop.permute.xlu0 %88
    %v90 = vlaneseq
    %v91 = vand.u32 %v90, 127
    %vm92 = vcmp.lt.s32.totalorder %v91, 112
    %v93 = vsel %vm92, %v87, %v89
    %v94 = vsel %vm92, %v89, %v87
    %v95 = vstv %s79
    %v96 = vmul.f32 %v95, %v93
    %v97 = vmul.f32 %v95, %v94
    %v100 = vrot.slane %v97, 6
    %vm101 = vcmask 1041408
    %v102 = vsel %vm101, %v96, %v100
    %v104 = vadd.f32 %v78, %v102
    %s105 = sld [smem:[#allocation4 + $0x2]]
    %106 = vst [vmem:[#allocation1] ss:$4 sm:$0xff] %v75
    %v107 = vld.sshfl [vmem:[#allocation1] sm:$0xff pattern:$0x73625140]
    %v108 = vld.sshfl [vmem:[#allocation1 + $0x8] sm:$0xff pattern:$0x73625140]
    %111 = vrot.lane.b32.xlu0 %v107, 96
    %v112 = vpop.permute.xlu0 %111
    %113 = vrot.lane.b32.xlu0 %v108, 96
    %v114 = vpop.permute.xlu0 %113
    %vm115 = vcmp.lt.s32.totalorder %v91, 96
    %v116 = vsel %vm115, %v112, %v114
    %v117 = vsel %vm115, %v114, %v112
    %v118 = vstv %s105
    %v119 = vmul.f32 %v118, %v116
    %v120 = vmul.f32 %v118, %v117
    %v123 = vrot.slane %v120, 6
    %v124 = vsel %vm101, %v119, %v123
    %v126 = vadd.f32 %v104, %v124
    %s127 = sld [smem:[#allocation4 + $0x3]]
    %128 = vst [vmem:[#allocation1] ss:$4 sm:$0xff] %v75
    %v129 = vld.sshfl [vmem:[#allocation1] sm:$0xff pattern:$0x73625140]
    %v130 = vld.sshfl [vmem:[#allocation1 + $0x8] sm:$0xff pattern:$0x73625140]
    %133 = vrot.lane.b32.xlu0 %v129, 80
    %v134 = vpop.permute.xlu0 %133
    %135 = vrot.lane.b32.xlu0 %v130, 80
    %v136 = vpop.permute.xlu0 %135
    %vm137 = vcmp.lt.s32.totalorder %v91, 80
    %v138 = vsel %vm137, %v134, %v136
    %v139 = vsel %vm137, %v136, %v134
    %v140 = vstv %s127
    %v141 = vmul.f32 %v140, %v138
    %v142 = vmul.f32 %v140, %v139
    %v145 = vrot.slane %v142, 6
    %v146 = vsel %vm101, %v141, %v145
    %v148 = vadd.f32 %v126, %v146
    %v149 = vmul.f32 %v148, %v70
    %v150 = vadd.f32 %v149, %v74
    %vm151 = vcmask 650242
    %vm152 = vmor %vm151, %vm101
    %153 = vst.msk [vmem:[#allocation9] sm:$0xf] %vm152, %v150
    // Predicated region
    $region30: #{meta_forward.3} parent=1 // pred_check
      _
    $region31: #{meta_forward.3} parent=1 // pred_check_branch
      %155 = sbr.rel (0) target = $region33
    $region32: #{meta_forward.3} parent=1 // pred_region
      %157 = vsyncadd [#allocation5], 0
      %s159 = sshll.u32 [#allocation9], 4
      %s160 = int_to_ptr.vmem [resolvable:$true] %s159
      %s161 = sshll.u32 %s5, 4
      %s162 = int_to_ptr.hbm [resolvable:$true] %s161
      %164 = dma.vmem_to_hbm [thread:$0]  %s160, 64, %s162, [#allocation5]
    $region33: #{meta_forward.3} parent=1 // pred_fallthru
      _
    // Predicated region
    $region34: #{meta_forward.3} parent=1 // pred_check
      _
    $region35: #{meta_forward.3} parent=1 // pred_check_branch
      %166 = sbr.rel (0) target = $region37
    $region36: #{meta_forward.3} parent=1 // pred_region
      %168 = dma.done [#allocation5], 64
    $region37: #{meta_forward.3} parent=1 // pred_fallthru
      _
    %169 = vsyncpa [#allocation5], 1
    %170 = vsyncpa [#allocation6], 1
    %171 = vsyncpa [#allocation8], 1

</llo_original>
